<compile_context>
chip_gen: v6e
topology: v6e:2x2x1
jax: 0.10.0
libtpu: 0.0.40
codegen_flags: <defaults>
</compile_context>

<pallas_src>
import jax
import jax.numpy as jnp
from jax.experimental import pallas as pl
from jax.experimental.pallas import tpu as pltpu

KH = KW = 4
STRIDE = 2
BN_EPS = 1e-5
LRELU_SLOPE = 0.2
VMEM_LIMIT = 48 * 1024 * 1024   # fits v7x's 64 MiB physical VMEM; > default scoped limit


def _round_up(x, m):
    return (x + m - 1) // m * m


# ------------------------------------------------------------------ pass 1
def conv_stats_kernel(p_ref, w_ref, y_ref, stats_ref):
    """Tiled conv-as-matmul + per-channel sum / sum-of-squares accumulation."""
    i = pl.program_id(1)                      # M-tile index (innermost, "arbitrary")

    @pl.when(i == 0)
    def _():
        stats_ref[...] = jnp.zeros_like(stats_ref)

    # MXU: bf16 x bf16 -> f32 accumulate.
    acc = jnp.dot(p_ref[...], w_ref[...], preferred_element_type=jnp.float32)
    y_ref[...] = acc

    # Per-channel partial sums for BatchNorm (single sweep over this tile).
    # Padded rows are exact zeros (zero patches x W), so they contribute nothing.
    s = jnp.sum(acc, axis=0, keepdims=True)          # (1, ct)
    ss = jnp.sum(acc * acc, axis=0, keepdims=True)   # (1, ct)
    row = jax.lax.broadcasted_iota(jnp.int32, stats_ref.shape, 0)
    stats_ref[...] += jnp.where(row == 0, s, jnp.where(row == 1, ss, 0.0))


# ------------------------------------------------------------------ pass 2
def bn_lrelu_kernel(y_ref, scale_ref, shift_ref, o_ref):
    """Folded BatchNorm affine + LeakyReLU(0.2)."""
    z = y_ref[...] * scale_ref[...] + shift_ref[...]
    o_ref[...] = jnp.where(z >= 0, z, LRELU_SLOPE * z).astype(o_ref.dtype)


def _im2col(x):
    """x: (N, Cin, H, W) -> patches (N*Hout*Wout, Cin*KH*KW), OIHW weight ordering."""
    n, cin, h, w = x.shape
    hout = (h - KH) // STRIDE + 1
    wout = (w - KW) // STRIDE + 1
    cols = []
    for kh in range(KH):
        for kw in range(KW):
            cols.append(x[:, :, kh:kh + STRIDE * hout:STRIDE,
                             kw:kw + STRIDE * wout:STRIDE])       # (N, Cin, Hout, Wout)
    p = jnp.stack(cols, axis=2)                                   # (N, Cin, KH*KW, Hout, Wout)
    p = jnp.transpose(p, (0, 3, 4, 1, 2))                         # (N, Hout, Wout, Cin, KH*KW)
    return p.reshape(n * hout * wout, cin * KH * KW), hout, wout


def cnn_block(x, w, b, gamma, beta, *, m_tile=256, cout_tile=128):
    """x: (N, Cin, H, W) NCHW, w: (Cout, Cin, KH, KW) OIHW -> (N, Cout, Hout, Wout) f32.

    m_tile:    conv-output rows per grid step (multiple of 16; ~256-512 fits
               v5e/v6e VMEM, halve for very large K on v7x's 64 MiB VMEM).
    cout_tile: output-channel tile (multiple of 128; 256 fills the v6e/v7x MXU).
    """
    n, cin, h, _ = x.shape
    cout = w.shape[0]

    # im2col in bf16 (halves HBM traffic into the matmul; f32 accumulate in-kernel).
    patches, hout, wout = _im2col(x.astype(jnp.bfloat16))         # (M, K)
    m, k = patches.shape

    m_tile = max(16, _round_up(m_tile, 16))
    cout_tile = max(128, _round_up(cout_tile, 128))
    m_p = _round_up(m, m_tile)
    k_p = _round_up(k, 128)
    cout_p = _round_up(cout, cout_tile)
    n_mt = m_p // m_tile
    n_ct = cout_p // cout_tile

    patches = jnp.pad(patches, ((0, m_p - m), (0, k_p - k)))
    w2d = jnp.pad(w.reshape(cout, cin * KH * KW).T.astype(jnp.bfloat16),
                  ((0, k_p - k), (0, cout_p - cout)))             # (K_p, Cout_p)
    # Conv bias `b` is intentionally NOT applied: under train-mode BatchNorm the
    # per-channel bias is exactly cancelled by the mean subtraction (pure no-op).
    gamma_p = jnp.pad(gamma.astype(jnp.float32), (0, cout_p - cout))
    beta_p = jnp.pad(beta.astype(jnp.float32), (0, cout_p - cout))

    # ---- pass 1: tiled matmul + per-channel sum / sumsq -------------------
    cost1 = pl.CostEstimate(
        flops=2 * m_p * k_p * cout_p, transcendentals=0,
        bytes_accessed=m_p * k_p * 2 + k_p * cout_p * 2 + m_p * cout_p * 4 + 8 * cout_p * 4)
    y, stats = pl.pallas_call(
        conv_stats_kernel,
        out_shape=(jax.ShapeDtypeStruct((m_p, cout_p), jnp.float32),
                   jax.ShapeDtypeStruct((8, cout_p), jnp.float32)),
        grid=(n_ct, n_mt),
        in_specs=[
            pl.BlockSpec((m_tile, k_p), lambda j, i: (i, 0)),
            pl.BlockSpec((k_p, cout_tile), lambda j, i: (0, j)),
        ],
        out_specs=(
            pl.BlockSpec((m_tile, cout_tile), lambda j, i: (i, j)),
            pl.BlockSpec((8, cout_tile), lambda j, i: (0, j)),   # resident across M axis
        ),
        compiler_params=pltpu.CompilerParams(
            dimension_semantics=("parallel", "arbitrary"),
            vmem_limit_bytes=VMEM_LIMIT),
        cost_estimate=cost1,
    )(patches, w2d)

    # ---- fold BN into per-channel scale / shift (O(Cout) work) ------------
    # Padded rows/channels contribute exactly zero to sum/sumsq; divide by the
    # TRUE element count M = N*Hout*Wout (not the padded/tile height).
    m_true = float(m)
    mean = stats[0, :] / m_true
    # E[x^2]-E[x]^2 accumulated in f32; clamp tiny negatives from cancellation.
    var = jnp.maximum(stats[1, :] / m_true - mean * mean, 0.0)
    inv = jax.lax.rsqrt(var + BN_EPS)
    scale = (gamma_p * inv).reshape(1, cout_p)
    shift = (beta_p - mean * gamma_p * inv).reshape(1, cout_p)

    # ---- pass 2: normalize + LeakyReLU (fully parallel, lane-dense) -------
    cost2 = pl.CostEstimate(
        flops=3 * m_p * cout_p, transcendentals=0,
        bytes_accessed=2 * m_p * cout_p * 4 + 2 * cout_p * 4)
    out2d = pl.pallas_call(
        bn_lrelu_kernel,
        out_shape=jax.ShapeDtypeStruct((m_p, cout_p), jnp.float32),
        grid=(n_ct, n_mt),
        in_specs=[
            pl.BlockSpec((m_tile, cout_tile), lambda j, i: (i, j)),
            pl.BlockSpec((1, cout_tile), lambda j, i: (0, j)),
            pl.BlockSpec((1, cout_tile), lambda j, i: (0, j)),
        ],
        out_specs=pl.BlockSpec((m_tile, cout_tile), lambda j, i: (i, j)),
        compiler_params=pltpu.CompilerParams(
            dimension_semantics=("parallel", "parallel"),
            vmem_limit_bytes=VMEM_LIMIT),
        cost_estimate=cost2,
    )(y, scale, shift)

    out = out2d[:m, :cout].reshape(n, hout, wout, cout)
    return jnp.transpose(out, (0, 3, 1, 2))                       # back to NCHW


def _reference(x, w, b, gamma, beta):
    # Quantize the conv inputs to bf16 exactly like the kernel's MXU inputs; all
    # other math stays f32, so the comparison isolates algorithmic correctness.
    xq = x.astype(jnp.bfloat16).astype(jnp.float32)
    wq = w.astype(jnp.bfloat16).astype(jnp.float32)
    y = jax.lax.conv_general_dilated(
        xq, wq, window_strides=(STRIDE, STRIDE), padding='VALID',
        dimension_numbers=('NCHW', 'OIHW', 'NCHW'),
        precision=jax.lax.Precision.HIGHEST) + b.reshape(1, -1, 1, 1)
    mean = y.mean(axis=(0, 2, 3), keepdims=True)
    var = ((y - mean) ** 2).mean(axis=(0, 2, 3), keepdims=True)
    yn = (y - mean) / jnp.sqrt(var + BN_EPS)
    yn = yn * gamma.reshape(1, -1, 1, 1) + beta.reshape(1, -1, 1, 1)
    return jnp.where(yn >= 0, yn, LRELU_SLOPE * yn)


if __name__ == "__main__":
    key = jax.random.PRNGKey(0)
    N, Cin, H, W = 2, 4, 16, 16
    Cout = 8

    kx, kw, kb, kg, kbe = jax.random.split(key, 5)
    x = jax.random.normal(kx, (N, Cin, H, W), dtype=jnp.float32)
    fan_in = Cin * KH * KW
    bound = 1.0 / (fan_in ** 0.5)
    w = jax.random.uniform(kw, (Cout, Cin, KH, KW), jnp.float32, -bound, bound)
    b = jax.random.uniform(kb, (Cout,), jnp.float32, -bound, bound)
    gamma = jax.random.uniform(kg, (Cout,), jnp.float32, 0.5, 1.5)
    beta = jax.random.uniform(kbe, (Cout,), jnp.float32, -0.5, 0.5)

    # Small m_tile so the test exercises multi-step stat accumulation across the M grid
    # (M = 98 -> padded 128 -> 4 grid steps).
    out = cnn_block(x, w, b, gamma, beta, m_tile=32, cout_tile=128)
    jax.block_until_ready(out)

    ref = _reference(x, w, b, gamma, beta)
    hout = (H - KH) // STRIDE + 1
    wout = (W - KW) // STRIDE + 1
    assert out.shape == ref.shape == (N, Cout, hout, wout)
    # Tolerance covers f32 reduction-order differences; the (intentional) bf16
    # quantization of the MXU inputs is matched inside _reference.
    assert jnp.allclose(out, ref, atol=1e-3, rtol=1e-3), "mismatch vs pure-JAX reference"

    print("KERNEL_OK")
</pallas_src>

<mosaic_0001>
module attributes {stable_mosaic.version = 11 : i64} {
  func.func @conv_stats_kernel(%arg0: i32, %arg1: i32, %arg2: memref<32x128xbf16, #tpu.memory_space<vmem>>, %arg3: memref<128x128xbf16, #tpu.memory_space<vmem>>, %arg4: memref<32x128xf32, #tpu.memory_space<vmem>>, %arg5: memref<8x128xf32, #tpu.memory_space<vmem>>) attributes {dimension_semantics = [#tpu.dimension_semantics<parallel>, #tpu.dimension_semantics<arbitrary>], iteration_bounds = array<i64: 1, 4>, scalar_prefetch = 0 : i64, scratch_operands = 0 : i64, tpu.core_type = #tpu.core_type<tc>, window_params = [{transform_indices = @transform_0, window_bounds = array<i64: 32, 128>}, {transform_indices = @transform_1, window_bounds = array<i64: 128, 128>}, {transform_indices = @transform_2, window_bounds = array<i64: 32, 128>}, {transform_indices = @transform_3, window_bounds = array<i64: 8, 128>}]} {
    %c0_i32 = arith.constant 0 : i32
    %0 = arith.cmpi eq, %arg1, %c0_i32 : i32
    %1 = arith.extui %0 : i1 to i32
    %c0_i32_0 = arith.constant 0 : i32
    %2 = arith.cmpi ne, %1, %c0_i32_0 : i32
    scf.if %2 {
      %cst_14 = arith.constant 0.000000e+00 : f32
      %27 = vector.broadcast %cst_14 : f32 to vector<8x128xf32>
      %c0_15 = arith.constant 0 : index
      %c0_16 = arith.constant 0 : index
      %28 = vector.load %arg5[%c0_15, %c0_16] : memref<8x128xf32, #tpu.memory_space<vmem>>, vector<8x128xf32>
      tpu.vector_store %arg5[%c0_15, %c0_16], %27 {strides = array<i32>} : memref<8x128xf32, #tpu.memory_space<vmem>>, vector<8x128xf32>,
    } else {
    }
    %c0 = arith.constant 0 : index
    %c0_1 = arith.constant 0 : index
    %3 = vector.load %arg2[%c0, %c0_1] : memref<32x128xbf16, #tpu.memory_space<vmem>>, vector<32x128xbf16>
    %c0_2 = arith.constant 0 : index
    %c0_3 = arith.constant 0 : index
    %4 = vector.load %arg3[%c0_2, %c0_3] : memref<128x128xbf16, #tpu.memory_space<vmem>>, vector<128x128xbf16>
    %cst = arith.constant dense<0.000000e+00> : vector<32x128xf32>
    %5 = tpu.matmul %3, %4, %cst {dimension_numbers = #tpu.dot_dimension_numbers<[1], [0], [0], [1], [0, 0, 1, 1], [], []>} : vector<32x128xbf16>, vector<128x128xbf16>, vector<32x128xf32> -> vector<32x128xf32>
    %c0_4 = arith.constant 0 : index
    %c0_5 = arith.constant 0 : index
    %6 = vector.load %arg4[%c0_4, %c0_5] : memref<32x128xf32, #tpu.memory_space<vmem>>, vector<32x128xf32>
    tpu.vector_store %arg4[%c0_4, %c0_5], %5 {strides = array<i32>} : memref<32x128xf32, #tpu.memory_space<vmem>>, vector<32x128xf32>,
    %cst_6 = arith.constant dense<0.000000e+00> : vector<128xf32>
    %7 = vector.multi_reduction <add>, %5, %cst_6 [0] : vector<32x128xf32> to vector<128xf32>
    %8 = vector.shape_cast %7 : vector<128xf32> to vector<1x128xf32>
    %9 = arith.mulf %5, %5 : vector<32x128xf32>
    %cst_7 = arith.constant dense<0.000000e+00> : vector<128xf32>
    %10 = vector.multi_reduction <add>, %9, %cst_7 [0] : vector<32x128xf32> to vector<128xf32>
    %11 = vector.shape_cast %10 : vector<128xf32> to vector<1x128xf32>
    %12 = tpu.iota {dimensions = array<i32: 0>} : vector<8x128xi32>
    %c0_8 = arith.constant 0 : index
    %c0_9 = arith.constant 0 : index
    %13 = vector.load %arg5[%c0_8, %c0_9] : memref<8x128xf32, #tpu.memory_space<vmem>>, vector<8x128xf32>
    %c0_i32_10 = arith.constant 0 : i32
    %14 = vector.broadcast %c0_i32_10 : i32 to vector<8x128xi32>
    %15 = arith.cmpi eq, %12, %14 : vector<8x128xi32>
    %c1_i32 = arith.constant 1 : i32
    %16 = vector.broadcast %c1_i32 : i32 to vector<8x128xi32>
    %17 = arith.cmpi eq, %12, %16 : vector<8x128xi32>
    %cst_11 = arith.constant 0.000000e+00 : f32
    %18 = vector.shape_cast %11 : vector<1x128xf32> to vector<1x128xf32>
    %19 = vector.broadcast %18 : vector<1x128xf32> to vector<8x128xf32>
    %20 = vector.broadcast %cst_11 : f32 to vector<8x128xf32>
    %21 = arith.select %17, %19, %20 : vector<8x128xi1>, vector<8x128xf32>
    %22 = vector.shape_cast %8 : vector<1x128xf32> to vector<1x128xf32>
    %23 = vector.broadcast %22 : vector<1x128xf32> to vector<8x128xf32>
    %24 = arith.select %15, %23, %21 : vector<8x128xi1>, vector<8x128xf32>
    %25 = arith.addf %13, %24 : vector<8x128xf32>
    %c0_12 = arith.constant 0 : index
    %c0_13 = arith.constant 0 : index
    %26 = vector.load %arg5[%c0_12, %c0_13] : memref<8x128xf32, #tpu.memory_space<vmem>>, vector<8x128xf32>
    tpu.vector_store %arg5[%c0_12, %c0_13], %25 {strides = array<i32>} : memref<8x128xf32, #tpu.memory_space<vmem>>, vector<8x128xf32>,
    return
  }
  func.func @transform_0(%arg0: i32, %arg1: i32) -> (i32, i32) {
    %c0_i32 = arith.constant 0 : i32
    %c0_i32_0 = arith.constant 0 : i32
    return %arg1, %c0_i32 : i32, i32
  }
  func.func @transform_1(%arg0: i32, %arg1: i32) -> (i32, i32) {
    %c0_i32 = arith.constant 0 : i32
    %c0_i32_0 = arith.constant 0 : i32
    return %c0_i32, %arg0 : i32, i32
  }
  func.func @transform_2(%arg0: i32, %arg1: i32) -> (i32, i32) {
    %c0_i32 = arith.constant 0 : i32
    return %arg1, %arg0 : i32, i32
  }
  func.func @transform_3(%arg0: i32, %arg1: i32) -> (i32, i32) {
    %c0_i32 = arith.constant 0 : i32
    %c0_i32_0 = arith.constant 0 : i32
    return %c0_i32, %arg0 : i32, i32
  }
}

</mosaic_0001>

<llo_original>
// kernel: tpu_custom_call.1
$region0: #{tpu_custom_call.1}
  #allocation0 [shape = 'u32[]', space=smem, size = 0x4, offset = 0x4, fixed_abs, tag = 'smem constant byte address 0x4 - core index']
  #allocation1 [shape = 'u32[144,128]{1,0:T(1,128)}', space=vmem, size = 0x12000, scoped, tag = 'internal scratch']
  %s0 = inlined_call_operand.hbm [shape: bf16[128,128], index: 0, kind: input, shape index: {}]
  %s1 = inlined_call_operand.hbm [shape: bf16[128,128], index: 1, kind: input, shape index: {}]
  %s2 = inlined_call_operand.hbm [shape: f32[128,128], index: 2, kind: output, shape index: {0}]
  %s3 = inlined_call_operand.hbm [shape: f32[8,128], index: 3, kind: output, shape index: {1}]
  %4 = xla_tuple %s2, %s3
  %s5 = sld [smem:[#allocation0]]
  $region61: #{tpu_custom_call.1} parent=0
    _
  %s7 = ssub.s32 1, %s5
  %s8 = scalar_select 0, %s7, %s5
  $region1: #{tpu_custom_call.1} parent=0
    #allocation2 [shape = 'u8[16384]{0}', space=vmem, size = 0x4000, scoped, tag = 'input window, operand 0']
    #allocation3 [shape = 's32[2]{0}', space=sflag, size = 0x8, scoped, tag = 'scoped memory for tpu_custom_call.1']
    #allocation4 [shape = 's32[2]{0}', space=sflag, size = 0x8, scoped, tag = 'scoped memory for tpu_custom_call.1']
    #allocation5 [shape = 'u8[32768]{0}', space=vmem, size = 0x8000, scoped, tag = 'input window, operand 1, single buffered']
    #allocation6 [shape = 's32[1]{0}', space=sflag, size = 0x4, scoped, tag = 'scoped memory for tpu_custom_call.1']
    #allocation7 [shape = 'u8[32768]{0}', space=vmem, size = 0x8000, scoped, tag = 'output window, operand 0']
    #allocation8 [shape = 'u8[4096]{0}', space=vmem, size = 0x1000, scoped, tag = 'output window, operand 1, single buffered']
    #allocation9 [shape = 's32[1]{0}', space=sflag, size = 0x4, scoped, tag = 'scoped memory for tpu_custom_call.1']
    %9 = vsyncpa [#allocation3], 0
    %s10 = scalar_lea.sflag [#allocation3], 1
    %11 = vsyncpa %s10, 0
    %12 = vsyncpa [#allocation6], 0
    %13 = vsyncpa [#allocation4], 0
    %s14 = scalar_lea.sflag [#allocation4], 1
    %15 = vsyncpa %s14, 0
    %16 = vsyncpa [#allocation9], 0
    loop: start=0, step=1, limit=6
    $region2: #{tpu_custom_call.1} parent=1 // loop_pre_header
      _
    $region3: #{tpu_custom_call.1} parent=1 // loop_header
      %s18 = sphi 0, %s22
      %p19 = scmp.ge.s32.totalorder %s18, 6
      %s25 = sphi 0, %s37
      %s26 = sphi 0, %s33
      %s27 = sphi 0, %s25
      %s28 = sphi 0, %s26
      %s29 = sphi 0, %s27
      %s30 = sphi 0, %s28
      %s40 = sphi 0, %s42
      %s43 = sphi 0, %s40
      %s44 = sphi 0, %s43
      %s60 = sphi 0, %s44
      %s66 = sphi 0, %s68
      %s69 = sphi 0, %s66
      %s70 = sphi 0, %s69
      %s86 = sphi 0, %s70
      %s94 = sphi 0, %s96
      %s97 = sphi 0, %s94
      %s98 = sphi 0, %s97
      %s114 = sphi 0, %s98
      %s120 = sphi 0, %s122
      %s123 = sphi 0, %s120
      %s124 = sphi 0, %s123
      %s140 = sphi 0, %s124
    $region4: #{tpu_custom_call.1} parent=1 // loop_header_branch
      %21 = sbr.rel (%p19) target = $region8
    $region5: #{tpu_custom_call.1} parent=1 // loop_body
      %s23 = ssub.s32 %s18, 1
      %s24 = ssub.s32 %s18, 2
      %s31 = sadd.s32 1, %s26
      %p32 = scmp.ge.s32.totalorder %s31, 4
      %s33 = scalar_select %p32, 0, %s31
      %s34 = sadd.s32 1, %s25
      %s35 = scalar_select %p32, %s34, %s25
      %p36 = scmp.ge.s32.totalorder %s35, 1
      %s37 = scalar_select %p36, 0, %s35
      %s38 = ssub.s32 %s26, %s33
      %p39 = scmp.eq.s32.totalorder %s38, 0
      %s41 = sadd.s32 %s40, 1
      %s42 = scalar_select %p39, %s40, %s41
      %p45 = pneg %p39
      %p46 = scmp.eq.s32.totalorder %s18, 3
      %p47 = por %p45, %p46
      %p48 = scmp.ne.s32.totalorder %s40, %s43
      %p49 = scmp.eq.s32.totalorder %s18, 0
      %p50 = por %p48, %p49
      %p51 = scmp.ne.s32.totalorder %s40, %s43
      %p52 = scmp.eq.s32.totalorder %s23, 3
      %p53 = por %p51, %p52
      %p54 = scmp.ne.s32.totalorder %s43, %s44
      %p55 = scmp.eq.s32.totalorder %s23, 0
      %p56 = por %p54, %p55
      %p57 = scmp.ne.s32.totalorder %s43, %s44
      %p58 = scmp.eq.s32.totalorder %s24, 3
      %p59 = por %p57, %p58
      %p61 = scmp.ne.s32.totalorder %s44, %s60
      %p62 = scmp.eq.s32.totalorder %s24, 0
      %p63 = por %p61, %p62
      %s64 = ssub.s32 %s25, %s37
      %p65 = scmp.eq.s32.totalorder %s64, 0
      %s67 = sadd.s32 %s66, 1
      %s68 = scalar_select %p65, %s66, %s67
      %p71 = pneg %p65
      %p72 = scmp.eq.s32.totalorder %s18, 3
      %p73 = por %p71, %p72
      %p74 = scmp.ne.s32.totalorder %s66, %s69
      %p75 = scmp.eq.s32.totalorder %s18, 0
      %p76 = por %p74, %p75
      %p77 = scmp.ne.s32.totalorder %s66, %s69
      %p78 = scmp.eq.s32.totalorder %s23, 3
      %p79 = por %p77, %p78
      %p80 = scmp.ne.s32.totalorder %s69, %s70
      %p81 = scmp.eq.s32.totalorder %s23, 0
      %p82 = por %p80, %p81
      %p83 = scmp.ne.s32.totalorder %s69, %s70
      %p84 = scmp.eq.s32.totalorder %s24, 3
      %p85 = por %p83, %p84
      %p87 = scmp.ne.s32.totalorder %s70, %s86
      %p88 = scmp.eq.s32.totalorder %s24, 0
      %p89 = por %p87, %p88
      %s90 = ssub.s32 %s26, %s33
      %s91 = ssub.s32 %s25, %s37
      %s92 = sor.u32 %s90, %s91
      %p93 = scmp.eq.s32.totalorder %s92, 0
      %s95 = sadd.s32 %s94, 1
      %s96 = scalar_select %p93, %s94, %s95
      %p99 = pneg %p93
      %p100 = scmp.eq.s32.totalorder %s18, 3
      %p101 = por %p99, %p100
      %p102 = scmp.ne.s32.totalorder %s94, %s97
      %p103 = scmp.eq.s32.totalorder %s18, 0
      %p104 = por %p102, %p103
      %p105 = scmp.ne.s32.totalorder %s94, %s97
      %p106 = scmp.eq.s32.totalorder %s23, 3
      %p107 = por %p105, %p106
      %p108 = scmp.ne.s32.totalorder %s97, %s98
      %p109 = scmp.eq.s32.totalorder %s23, 0
      %p110 = por %p108, %p109
      %p111 = scmp.ne.s32.totalorder %s97, %s98
      %p112 = scmp.eq.s32.totalorder %s24, 3
      %p113 = por %p111, %p112
      %p115 = scmp.ne.s32.totalorder %s98, %s114
      %p116 = scmp.eq.s32.totalorder %s24, 0
      %p117 = por %p115, %p116
      %s118 = ssub.s32 %s25, %s37
      %p119 = scmp.eq.s32.totalorder %s118, 0
      %s121 = sadd.s32 %s120, 1
      %s122 = scalar_select %p119, %s120, %s121
      %p125 = pneg %p119
      %p126 = scmp.eq.s32.totalorder %s18, 3
      %p127 = por %p125, %p126
      %p128 = scmp.ne.s32.totalorder %s120, %s123
      %p129 = scmp.eq.s32.totalorder %s18, 0
      %p130 = por %p128, %p129
      %p131 = scmp.ne.s32.totalorder %s120, %s123
      %p132 = scmp.eq.s32.totalorder %s23, 3
      %p133 = por %p131, %p132
      %p134 = scmp.ne.s32.totalorder %s123, %s124
      %p135 = scmp.eq.s32.totalorder %s23, 0
      %p136 = por %p134, %p135
      %p137 = scmp.ne.s32.totalorder %s123, %s124
      %p138 = scmp.eq.s32.totalorder %s24, 3
      %p139 = por %p137, %p138
      %p141 = scmp.ne.s32.totalorder %s124, %s140
      %p142 = scmp.eq.s32.totalorder %s24, 0
      %p143 = por %p141, %p142
      %p144 = scmp.le.s32.totalorder 1, %s18
      %p145 = scmp.lt.s32.totalorder %s18, 5
      %p146 = pnand %p144, %p145
      %p147 = pneg %p146
      // Predicated region
      $region9: #{tpu_custom_call.1} parent=5 // pred_check
        _
      $region10: #{tpu_custom_call.1} parent=5 // pred_check_branch
        %149 = sbr.rel (%p146) target = $region12
      $region11: #{tpu_custom_call.1} parent=5 // pred_region
        %s150 = ssub.s32 %s18, 1
        // Predicated region
        $region13: #{tpu_custom_call.1} parent=11 // pred_check
          %p151 = pneg %p82
        $region14: #{tpu_custom_call.1} parent=11 // pred_check_branch
          %153 = sbr.rel (%p151) target = $region16
        $region15: #{tpu_custom_call.1} parent=11 // pred_region
          %s155 = ssub.s32 1024, 1024
          %156 = vsyncadd [#allocation6], %s155
          %s157 = smul.addr %s27, 64
          %s158 = scalar_lea.hbm %s1, %s157
          %s159 = sshll.u32 [#allocation5], 4
          %s160 = int_to_ptr.vmem [resolvable:$true] %s159
          %165 = dma.hbm_to_vmem [thread:$0]  %s158, 1024, %s160, [#allocation6], 64, 64, 4
        $region16: #{tpu_custom_call.1} parent=11 // pred_fallthru
          _
      $region12: #{tpu_custom_call.1} parent=5 // pred_fallthru
        _
      %p166 = scmp.lt.s32.totalorder %s18, 4
      // Predicated region
      $region17: #{tpu_custom_call.1} parent=5 // pred_check
        %p167 = pneg %p166
      $region18: #{tpu_custom_call.1} parent=5 // pred_check_branch
        %169 = sbr.rel (%p167) target = $region20
      $region19: #{tpu_custom_call.1} parent=5 // pred_region
        // Predicated region
        $region21: #{tpu_custom_call.1} parent=19 // pred_check
          %p170 = pneg %p50
        $region22: #{tpu_custom_call.1} parent=19 // pred_check_branch
          %172 = sbr.rel (%p170) target = $region24
        $region23: #{tpu_custom_call.1} parent=19 // pred_region
          %s173 = sand.u32 %s40, 1
          %s174 = scalar_lea.sflag [#allocation3], %s173
          %s175 = sand.u32 %s40, 1
          %s176 = smul.addr %s175, 16
          %s177 = scalar_lea.vmem [#allocation2], %s176
          %s178 = smul.u32 4, %s26
          %s180 = ssub.s32 256, 256
          %181 = vsyncadd %s174, %s180
          %s182 = smul.addr %s178, 64
          %s183 = scalar_lea.hbm %s0, %s182
          %s184 = sshll.u32 %s177, 4
          %s185 = int_to_ptr.vmem [resolvable:$true] %s184
          %190 = dma.hbm_to_vmem [thread:$0]  %s183, 256, %s185, %s174, 64, 64, 4
        $region24: #{tpu_custom_call.1} parent=19 // pred_fallthru
          _
      $region20: #{tpu_custom_call.1} parent=5 // pred_fallthru
        _
      %p191 = scmp.le.s32.totalorder 1, %s18
      %p192 = scmp.lt.s32.totalorder %s18, 5
      %p193 = pnand %p191, %p192
      %p194 = pneg %p193
      // Predicated region
      $region25: #{tpu_custom_call.1} parent=5 // pred_check
        _
      $region26: #{tpu_custom_call.1} parent=5 // pred_check_branch
        %196 = sbr.rel (%p193) target = $region28
      $region27: #{tpu_custom_call.1} parent=5 // pred_region
        %s197 = ssub.s32 %s18, 1
        %s198 = sand.u32 %s43, 1
        %s199 = scalar_lea.sflag [#allocation3], %s198
        %s200 = sand.u32 %s43, 1
        %s201 = smul.addr %s200, 16
        %s202 = scalar_lea.vmem [#allocation2], %s201
        // Predicated region
        $region29: #{tpu_custom_call.1} parent=27 // pred_check
          %p203 = pneg %p56
        $region30: #{tpu_custom_call.1} parent=27 // pred_check_branch
          %205 = sbr.rel (%p203) target = $region32
        $region31: #{tpu_custom_call.1} parent=27 // pred_region
          %206 = dma.done %s199, 256
        $region32: #{tpu_custom_call.1} parent=27 // pred_fallthru
          _
        // Predicated region
        $region33: #{tpu_custom_call.1} parent=27 // pred_check
          %p207 = pneg %p82
        $region34: #{tpu_custom_call.1} parent=27 // pred_check_branch
          %209 = sbr.rel (%p207) target = $region36
        $region35: #{tpu_custom_call.1} parent=27 // pred_region
          %210 = dma.done [#allocation6], 1024
        $region36: #{tpu_custom_call.1} parent=27 // pred_fallthru
          _
        %s211 = sand.u32 %s43, 1
        %s212 = scalar_lea.sflag [#allocation3], %s211
        %s213 = sand.u32 %s43, 1
        %s214 = smul.addr %s213, 16
        %s215 = scalar_lea.vmem [#allocation2], %s214
        %p216 = pneg %p56
        %p217 = pneg %p53
        %p218 = pneg %p82
        %p219 = pneg %p79
        %p220 = pneg %p110
        %p221 = pneg %p107
        %s222 = sand.u32 %s97, 1
        %s223 = scalar_lea.sflag [#allocation4], %s222
        %s224 = sand.u32 %s97, 1
        %s225 = smul.addr %s224, 32
        %s226 = scalar_lea.vmem [#allocation7], %s225
        %p227 = pneg %p136
        %p228 = pneg %p133
        %s229 = smul.u32 4, %s28
        %s230 = smul.u32 4, %s28
        %p232 = scmp.eq.s32.totalorder %s28, 0
        // Predicated region
        $region37: #{tpu_custom_call.1} parent=27 // pred_check
          %p233 = pneg %p232
        $region38: #{tpu_custom_call.1} parent=27 // pred_check_branch
          %235 = sbr.rel (%p233) target = $region40
        $region39: #{tpu_custom_call.1} parent=27 // pred_region
          %236 = vst [vmem:[#allocation8] sm:$0xff] 0.0
        $region40: #{tpu_custom_call.1} parent=27 // pred_fallthru
          _
        %v237 = vld [vmem:[%s202] sm:$0xf]
        %v238 = vld [vmem:[%s202 + $0x4] sm:$0xf]
        %v239 = vld [vmem:[%s202 + $0x8] sm:$0xf]
        %v240 = vld [vmem:[%s202 + $0xc] sm:$0xf]
        %v241 = vld [vmem:[#allocation5] sm:$0xf]
        %v242 = vld [vmem:[#allocation5 + $0x4] sm:$0xf]
        %v243 = vld [vmem:[#allocation5 + $0x8] sm:$0xf]
        %v244 = vld [vmem:[#allocation5 + $0xc] sm:$0xf]
        %v245 = vld [vmem:[#allocation5 + $0x10] sm:$0xf]
        %v246 = vld [vmem:[#allocation5 + $0x14] sm:$0xf]
        %v247 = vld [vmem:[#allocation5 + $0x18] sm:$0xf]
        %v248 = vld [vmem:[#allocation5 + $0x1c] sm:$0xf]
        %v249 = vld [vmem:[#allocation5 + $0x20] sm:$0xf]
        %v250 = vld [vmem:[#allocation5 + $0x24] sm:$0xf]
        %v251 = vld [vmem:[#allocation5 + $0x28] sm:$0xf]
        %v252 = vld [vmem:[#allocation5 + $0x2c] sm:$0xf]
        %v253 = vld [vmem:[#allocation5 + $0x30] sm:$0xf]
        %v254 = vld [vmem:[#allocation5 + $0x34] sm:$0xf]
        %v255 = vld [vmem:[#allocation5 + $0x38] sm:$0xf]
        %v256 = vld [vmem:[#allocation5 + $0x3c] sm:$0xf]
        %v261 = vunpack.c.l.b16 %v237
        %v262 = vunpack.c.l.b16 %v238
        %v263 = vunpack.c.l.b16 %v239
        %v264 = vunpack.c.l.b16 %v240
        %v265 = vpack.c.b16 %v262, %v261
        %v266 = vpack.c.b16 %v264, %v263
        %v285 = vunpack.c.l.b16 %v241
        %v286 = vunpack.c.l.b16 %v242
        %v287 = vunpack.c.l.b16 %v243
        %v288 = vunpack.c.l.b16 %v244
        %v289 = vunpack.c.l.b16 %v245
        %v290 = vunpack.c.l.b16 %v246
        %v291 = vunpack.c.l.b16 %v247
        %v292 = vunpack.c.l.b16 %v248
        %v293 = vunpack.c.l.b16 %v249
        %v294 = vunpack.c.l.b16 %v250
        %v295 = vunpack.c.l.b16 %v251
        %v296 = vunpack.c.l.b16 %v252
        %v297 = vunpack.c.l.b16 %v253
        %v298 = vunpack.c.l.b16 %v254
        %v299 = vunpack.c.l.b16 %v255
        %v300 = vunpack.c.l.b16 %v256
        %v301 = vpack.c.b16 %v286, %v285
        %v302 = vpack.c.b16 %v288, %v287
        %v303 = vpack.c.b16 %v290, %v289
        %v304 = vpack.c.b16 %v292, %v291
        %v305 = vpack.c.b16 %v294, %v293
        %v306 = vpack.c.b16 %v296, %v295
        %v307 = vpack.c.b16 %v298, %v297
        %v308 = vpack.c.b16 %v300, %v299
        %317 = vmatprep.subr.bf16.mxu0 0
        %318 = vmatpush1.bf16.msra.mxu0 %v308
        %319 = vmatprep.subr.bf16.mxu0 0
        %320 = vmatpush1.bf16.msra.mxu0 %v307
        %321 = vmatprep.subr.bf16.mxu0 0
        %322 = vmatpush1.bf16.msra.mxu0 %v306
        %323 = vmatprep.subr.bf16.mxu0 0
        %324 = vmatpush1.bf16.msra.mxu0 %v305
        %325 = vmatprep.subr.bf16.mxu0 0
        %326 = vmatpush1.bf16.msra.mxu0 %v304
        %327 = vmatprep.subr.bf16.mxu0 0
        %328 = vmatpush1.bf16.msra.mxu0 %v303
        %329 = vmatprep.subr.bf16.mxu0 0
        %330 = vmatpush1.bf16.msra.mxu0 %v302
        %331 = vmatprep.subr.bf16.mxu0 0
        %332 = vmatpush1.bf16.msra.mxu0 %v301
        %333 = vmatprep.subr.bf16.mxu0 0
        %334 = vmatpush2.bf16.msra.mxu0 0
        %335 = vmatprep.subr.bf16.mxu0 0
        %336 = vmatpush2.bf16.msra.mxu0 0
        %337 = vmatprep.subr.bf16.mxu0 0
        %338 = vmatpush2.bf16.msra.mxu0 0
        %339 = vmatprep.subr.bf16.mxu0 0
        %340 = vmatpush2.bf16.msra.mxu0 0
        %341 = vmatprep.subr.bf16.mxu0 0
        %342 = vmatpush2.bf16.msra.mxu0 0
        %343 = vmatprep.subr.bf16.mxu0 0
        %344 = vmatpush2.bf16.msra.mxu0 0
        %345 = vmatprep.subr.bf16.mxu0 0
        %346 = vmatpush2.bf16.msra.mxu0 0
        %347 = vmatprep.subr.bf16.mxu0 0
        %348 = vmatpush2.bf16.msra.mxu0 0
        %349 = vmatprep.mubr.bf16.mxu0 0
        %350 = vmatmul.mubr.bf16.gmra.mxu0 %v265
        %v351 = vpop.f32.mrf.mxu0
        %v352 = vadd.f32 0.0, %v351
        %v353 = vpop.f32.mrf.mxu0
        %v354 = vpop.f32.mrf.mxu0
        %v355 = vadd.f32 0.0, %v354
        %v356 = vpop.f32.mrf.mxu0
        %357 = vmatprep.mubr.bf16.mxu0 0
        %358 = vmatmul.mubr.bf16.gmra.mxu0 %v266
        %v359 = vpop.f32.mrf.mxu0
        %v360 = vadd.f32 0.0, %v359
        %v361 = vpop.f32.mrf.mxu0
        %v362 = vpop.f32.mrf.mxu0
        %v363 = vadd.f32 0.0, %v362
        %v364 = vpop.f32.mrf.mxu0
        %365 = vdwg.mxu0
        %366 = vst [vmem:[%s226] sm:$0xff] %v352
        %367 = vst [vmem:[%s226 + $0x8] sm:$0xff] %v355
        %368 = vst [vmem:[%s226 + $0x10] sm:$0xff] %v360
        %369 = vst [vmem:[%s226 + $0x18] sm:$0xff] %v363
        %v370 = vadd.f32 %v352, %v355
        %v371 = vadd.f32 %v370, %v360
        %v372 = vadd.f32 %v371, %v363
        %v373 = vrot.slane %v372, 4
        %v374 = vadd.f32 %v372, %v373
        %v375 = vrot.slane %v374, 2
        %v376 = vadd.f32 %v374, %v375
        %v377 = vrot.slane %v376, 1
        %v378 = vadd.f32 %v376, %v377
        %v379 = vmul.f32 %v352, %v352
        %v380 = vmul.f32 %v355, %v355
        %v381 = vmul.f32 %v360, %v360
        %v382 = vmul.f32 %v363, %v363
        %v383 = vadd.f32 %v379, %v380
        %v384 = vadd.f32 %v383, %v381
        %v385 = vadd.f32 %v384, %v382
        %v386 = vrot.slane %v385, 4
        %v387 = vadd.f32 %v385, %v386
        %v388 = vrot.slane %v387, 2
        %v389 = vadd.f32 %v387, %v388
        %v390 = vrot.slane %v389, 1
        %v391 = vadd.f32 %v389, %v390
        %v392 = vlaneseq
        %v393 = vshrl.u32 %v392, 7
        %v394 = vld [vmem:[#allocation8] sm:$0xff]
        %vm395 = vcmp.eq.s32.totalorder %v393, 0
        %vm396 = vcmp.eq.s32.totalorder %v393, 1
        %v397 = vsel %vm396, %v391, 0.0
        %v398 = vsel %vm395, %v378, %v397
        %v399 = vadd.f32 %v394, %v398
        %400 = vst [vmem:[#allocation8] sm:$0xff] %v399
        %s401 = sand.u32 %s97, 1
        %s402 = scalar_lea.sflag [#allocation4], %s401
        %s403 = sand.u32 %s97, 1
        %s404 = smul.addr %s403, 32
        %s405 = scalar_lea.vmem [#allocation7], %s404
        // Predicated region
        $region41: #{tpu_custom_call.1} parent=27 // pred_check
          %p406 = pneg %p107
        $region42: #{tpu_custom_call.1} parent=27 // pred_check_branch
          %408 = sbr.rel (%p406) target = $region44
        $region43: #{tpu_custom_call.1} parent=27 // pred_region
          %s409 = smul.u32 4, %s28
          %s411 = ssub.s32 512, 512
          %412 = vsyncadd %s402, %s411
          %s413 = sadd.s32 %s27, %s409
          %s414 = smul.addr %s413, 128
          %s415 = scalar_lea.hbm %s2, %s414
          %s416 = sshll.u32 %s405, 4
          %s417 = int_to_ptr.vmem [resolvable:$true] %s416
          %422 = dma.vmem_to_hbm [thread:$0]  %s417, 512, %s415, %s402, 128, 128, 8
        $region44: #{tpu_custom_call.1} parent=27 // pred_fallthru
          _
        // Predicated region
        $region45: #{tpu_custom_call.1} parent=27 // pred_check
          %p423 = pneg %p133
        $region46: #{tpu_custom_call.1} parent=27 // pred_check_branch
          %425 = sbr.rel (%p423) target = $region48
        $region47: #{tpu_custom_call.1} parent=27 // pred_region
          %s427 = ssub.s32 128, 128
          %428 = vsyncadd [#allocation9], %s427
          %s429 = smul.addr %s27, 128
          %s430 = scalar_lea.hbm %s3, %s429
          %s432 = sshll.u32 [#allocation8], 4
          %s433 = int_to_ptr.vmem [resolvable:$true] %s432
          %435 = dma.vmem_to_hbm [thread:$0]  %s433, 128, %s430, [#allocation9]
        $region48: #{tpu_custom_call.1} parent=27 // pred_fallthru
          _
        // Predicated region
        $region49: #{tpu_custom_call.1} parent=27 // pred_check
          %p436 = pneg %p133
        $region50: #{tpu_custom_call.1} parent=27 // pred_check_branch
          %438 = sbr.rel (%p436) target = $region52
        $region51: #{tpu_custom_call.1} parent=27 // pred_region
          %439 = dma.done [#allocation9], 128
        $region52: #{tpu_custom_call.1} parent=27 // pred_fallthru
          _
      $region28: #{tpu_custom_call.1} parent=5 // pred_fallthru
        _
      %p440 = scmp.le.s32.totalorder 2, %s18
      // Predicated region
      $region53: #{tpu_custom_call.1} parent=5 // pred_check
        %p441 = pneg %p440
      $region54: #{tpu_custom_call.1} parent=5 // pred_check_branch
        %443 = sbr.rel (%p441) target = $region56
      $region55: #{tpu_custom_call.1} parent=5 // pred_region
        %s444 = ssub.s32 %s18, 2
        // Predicated region
        $region57: #{tpu_custom_call.1} parent=55 // pred_check
          %p445 = pneg %p113
        $region58: #{tpu_custom_call.1} parent=55 // pred_check_branch
          %447 = sbr.rel (%p445) target = $region60
        $region59: #{tpu_custom_call.1} parent=55 // pred_region
          %s448 = sand.u32 %s98, 1
          %s449 = scalar_lea.sflag [#allocation4], %s448
          %s450 = sand.u32 %s98, 1
          %s451 = smul.addr %s450, 32
          %s452 = scalar_lea.vmem [#allocation7], %s451
          %453 = dma.done %s449, 512
        $region60: #{tpu_custom_call.1} parent=55 // pred_fallthru
          _
      $region56: #{tpu_custom_call.1} parent=5 // pred_fallthru
        _
    $region6: #{tpu_custom_call.1} parent=1 // loop_footer
      %s22 = sadd.s32 1, %s18
    $region7: #{tpu_custom_call.1} parent=1 // loop_footer_branch
      %17 = sbr.rel target = $region3
    $region8: #{tpu_custom_call.1} parent=1 // loop_exit
      _
    %454 = vsyncpa [#allocation3], 1
    %s455 = scalar_lea.sflag [#allocation3], 1
    %456 = vsyncpa %s455, 1
    %457 = vsyncpa [#allocation6], 1
    %458 = vsyncpa [#allocation4], 1
    %s459 = scalar_lea.sflag [#allocation4], 1
    %460 = vsyncpa %s459, 1
    %461 = vsyncpa [#allocation9], 1

</llo_original>
